<compile_context>
chip_gen: v7x
topology: tpu7x:2x2x1
jax: 0.10.0
libtpu: 0.0.40
codegen_flags: <defaults>
</compile_context>

<pallas_src>
import math
import functools

import jax
import jax.numpy as jnp
from jax.experimental import pallas as pl
from jax.experimental.pallas import tpu as pltpu


def _round_up(x, m):
    return ((x + m - 1) // m) * m


def _sublane_multiple(*dtypes):
    """Sublane alignment requirement for the smallest dtype involved."""
    min_bytes = min(jnp.dtype(d).itemsize for d in dtypes)
    return max(8, 32 // max(1, min_bytes))      # f32->8, bf16->16, int8->32


# Grid-invariant blocks (index_map -> (0, 0)) never change between grid steps,
# so a single buffer suffices.  Guarded so an older Pallas still runs (it just
# keeps the default 2 buffers and the VMEM plan accounts for that).
try:
    pl.BlockSpec((8, 128), lambda i: (0, 0), pipeline_mode=pl.Buffered(1))
    _HAS_BUFFERED = True
except Exception:  # pragma: no cover - older jax
    _HAS_BUFFERED = False
_CONST_BUFS = 1 if _HAS_BUFFERED else 2


def _const_spec(block_shape, index_map):
    if _HAS_BUFFERED:
        return pl.BlockSpec(block_shape, index_map, pipeline_mode=pl.Buffered(1))
    return pl.BlockSpec(block_shape, index_map)


# ----------------------------------------------------------------------------
# Kernel
# ----------------------------------------------------------------------------
def _fused_mlp_kernel(x_ref, *refs, num_layers, k_tiled):
    """Fused (linear + bias + ReLU) stack over one batch tile.

    refs = (w0, b0, ..., w_{L-1}, b_{L-1}, o_ref[, acc_ref]).
    Intermediate activations never leave VMEM/vregs; matmuls accumulate in f32.
    """
    o_ref = refs[2 * num_layers]

    def mlp_tail(h, start_layer):
        for l in range(start_layer, num_layers):
            w = refs[2 * l][...]
            b = refs[2 * l + 1][...]
            h = jnp.dot(h.astype(w.dtype), w, preferred_element_type=jnp.float32)
            h = jnp.maximum(h + b.astype(jnp.float32), 0.0)   # bias + ReLU in f32
        return h

    if not k_tiled:
        o_ref[...] = mlp_tail(x_ref[...], 0).astype(o_ref.dtype)
        return

    # K-tiled first layer: accumulate partial x @ W0 over the reduction grid axis.
    acc_ref = refs[2 * num_layers + 1]
    k = pl.program_id(1)
    nk = pl.num_programs(1)

    @pl.when(k == 0)
    def _():
        acc_ref[...] = jnp.zeros_like(acc_ref)

    w0 = refs[0][...]
    acc_ref[...] += jnp.dot(x_ref[...].astype(w0.dtype), w0,
                            preferred_element_type=jnp.float32)

    @pl.when(k == nk - 1)
    def _():
        b0 = refs[1][...]
        h = jnp.maximum(acc_ref[...] + b0.astype(jnp.float32), 0.0)
        o_ref[...] = mlp_tail(h, 1).astype(o_ref.dtype)


# ----------------------------------------------------------------------------
# Generation-aware tiling / VMEM plan
# ----------------------------------------------------------------------------
def _plan_tiles(pdims, w_dtypes, b_dtypes, x_dtype, out_dtype, batch,
                requested_tm=None, requested_tk=None):
    L = len(pdims) - 1
    phys_vmem = 128 << 20                       # v5e/v6e default
    try:
        phys_vmem = int(pltpu.get_tpu_info().vmem_capacity_bytes)
    except Exception:
        pass
    # Leave ~16 MiB headroom for compiler-internal scratch / output staging.
    vmem_cap = max(32 << 20, phys_vmem - (16 << 20))

    w_bytes = [pdims[l] * pdims[l + 1] * jnp.dtype(w_dtypes[l]).itemsize
               for l in range(L)]
    b_bytes = [pdims[l + 1] * jnp.dtype(b_dtypes[l]).itemsize for l in range(L)]
    resident_tail = _CONST_BUFS * (sum(w_bytes[1:]) + sum(b_bytes))

    # ---- K-tiling decision for the (potentially huge) first-layer weight ----
    full_k = pdims[0]
    w0_item = jnp.dtype(w_dtypes[0]).itemsize
    if requested_tk is not None:
        tk0 = int(requested_tk)
        if tk0 % 128 != 0 or full_k % tk0 != 0:
            raise ValueError("k_tile must be a multiple of 128 that divides the "
                             "padded input dim")
    else:
        tk0 = full_k
        w0_budget = max(vmem_cap - resident_tail - (12 << 20), vmem_cap // 4)
        if _CONST_BUFS * w_bytes[0] > w0_budget:
            per_k_row = pdims[1] * w0_item
            target = max(w0_budget // 2, 128 * per_k_row)   # 2 buffers once tiled
            nblk = full_k // 128
            tk0 = 128
            for d in range(nblk, 0, -1):
                if nblk % d == 0 and d * 128 * per_k_row <= target:
                    tk0 = d * 128
                    break
    nk = full_k // tk0
    w0_resident = (2 * tk0 * pdims[1] * w0_item) if nk > 1 else (_CONST_BUFS * w_bytes[0])
    param_resident = w0_resident + resident_tail

    # ---- batch tile (accurate per-row VMEM model, real dtypes / buffer counts) ----
    sub = _sublane_multiple(x_dtype, out_dtype)
    xi = jnp.dtype(x_dtype).itemsize
    oi = jnp.dtype(out_dtype).itemsize
    per_row = (2 * tk0 * xi                          # double-buffered x tile
               + 2 * pdims[-1] * oi                  # double-buffered out tile
               + (4 * pdims[1] if nk > 1 else 0)     # f32 accumulator scratch
               + 8 * max(pdims[1:]))                 # ~2 live f32 intermediates
    avail = max(vmem_cap - param_resident, per_row * sub)
    tm_cap = max(sub, (avail // per_row) // sub * sub)

    # v7x (64 MiB VMEM) -> smaller tiles; v5e/v6e (128 MiB) -> bigger tiles.
    target_tm = int(requested_tm) if requested_tm else \
        (256 if phys_vmem <= (64 << 20) else 512)
    tm = max(sub, (min(target_tm, tm_cap) // sub) * sub)
    tm = min(tm, _round_up(batch, sub))
    batch_p = _round_up(batch, tm)

    needed = param_resident + tm * per_row
    vmem_limit = int(min(vmem_cap, max(needed + needed // 4 + (4 << 20), 32 << 20)))
    return tm, tk0, batch_p, vmem_limit


# ----------------------------------------------------------------------------
# pallas_call wrapper (operates on pre-padded x / params)
# ----------------------------------------------------------------------------
def _fused_mlp_pallas(x_p, params, *, pdims, tm, tk0, out_dtype, vmem_limit, cost):
    num_layers = (len(params)) // 2
    batch_p = x_p.shape[0]
    nk = pdims[0] // tk0
    k_tiled = nk > 1

    in_specs = []
    if k_tiled:
        grid = (batch_p // tm, nk)
        in_specs.append(pl.BlockSpec((tm, tk0), lambda i, k: (i, k)))
        in_specs.append(pl.BlockSpec((tk0, pdims[1]), lambda i, k: (k, 0)))
        in_specs.append(_const_spec((1, pdims[1]), lambda i, k: (0, 0)))
        for l in range(1, num_layers):
            in_specs.append(_const_spec((pdims[l], pdims[l + 1]), lambda i, k: (0, 0)))
            in_specs.append(_const_spec((1, pdims[l + 1]), lambda i, k: (0, 0)))
        out_specs = pl.BlockSpec((tm, pdims[-1]), lambda i, k: (i, 0))
        scratch = [pltpu.VMEM((tm, pdims[1]), jnp.float32)]
        dim_sem = ("parallel", "arbitrary")
    else:
        grid = (batch_p // tm,)
        in_specs.append(pl.BlockSpec((tm, pdims[0]), lambda i: (i, 0)))
        for l in range(num_layers):
            in_specs.append(_const_spec((pdims[l], pdims[l + 1]), lambda i: (0, 0)))
            in_specs.append(_const_spec((1, pdims[l + 1]), lambda i: (0, 0)))
        out_specs = pl.BlockSpec((tm, pdims[-1]), lambda i: (i, 0))
        scratch = []
        dim_sem = ("parallel",)

    kernel = functools.partial(_fused_mlp_kernel, num_layers=num_layers,
                               k_tiled=k_tiled)
    return pl.pallas_call(
        kernel,
        out_shape=jax.ShapeDtypeStruct((batch_p, pdims[-1]), out_dtype),
        grid=grid,
        in_specs=in_specs,
        out_specs=out_specs,
        scratch_shapes=scratch,
        compiler_params=pltpu.CompilerParams(
            dimension_semantics=dim_sem, vmem_limit_bytes=vmem_limit),
        cost_estimate=cost,
    )(x_p, *params)


# ----------------------------------------------------------------------------
# Model
# ----------------------------------------------------------------------------
class DNNPallas:
    """JAX/Pallas port of deepctr_torch DNN (relu, no BN, dropout=0)."""

    def __init__(self, inputs_dim, hidden_units, *, init_std=1e-4,
                 channel_multiplier=1.0, seed=1024, dtype=jnp.float32,
                 batch_tile=None, k_tile=None):
        if len(hidden_units) == 0:
            raise ValueError("hidden_units is empty!!")
        dims = [int(inputs_dim)] + [int(h) for h in hidden_units]
        self.dims = dims
        self.pdims = [_round_up(d, 128) for d in dims]     # lane-dense padding
        self.channel_multiplier = channel_multiplier
        self.batch_tile = batch_tile
        self.k_tile = k_tile

        key = jax.random.PRNGKey(seed)
        self.weights, self.biases = [], []
        for i in range(len(dims) - 1):
            key, wk = jax.random.split(key)
            w = (jax.random.normal(wk, (dims[i], dims[i + 1]), dtype=jnp.float32)
                 * init_std).astype(dtype)
            b = jnp.zeros((dims[i + 1],), dtype=dtype)
            self.weights.append(w)
            self.biases.append(b)

        # One-time host-side prep (hoisted out of the forward path):
        #  * channel_multiplier < 1: zero trailing weight columns / bias entries
        #    (exactly the post-ReLU mask since relu(0 + 0) = 0).
        #  * zero-pad every feature axis to a multiple of 128 lanes.
        self.pw, self.pb = [], []
        for l, (w, b) in enumerate(zip(self.weights, self.biases)):
            out_dim = dims[l + 1]
            cutoff = math.ceil(out_dim * channel_multiplier)
            if cutoff < out_dim:
                w = w.at[:, cutoff:].set(0)
                b = b.at[cutoff:].set(0)
            w_p = (jnp.zeros((self.pdims[l], self.pdims[l + 1]), dtype=w.dtype)
                   .at[:dims[l], :out_dim].set(w))
            b_p = (jnp.zeros((1, self.pdims[l + 1]), dtype=b.dtype)
                   .at[0, :out_dim].set(b))
            self.pw.append(w_p)
            self.pb.append(b_p)
        self._params = [p for wb in zip(self.pw, self.pb) for p in wb]

        self._fwd_cache = {}
        # TODO(synk): use_bn (BatchNorm1d running stats) and dropout_rate>0
        # (pltpu.prng_* mask) are identity in this config and not implemented.

    def _build_forward(self, batch, x_dtype, out_dtype):
        dims, pdims = self.dims, self.pdims
        L = len(dims) - 1
        tm, tk0, batch_p, vmem_limit = _plan_tiles(
            pdims, [w.dtype for w in self.pw], [b.dtype for b in self.pb],
            x_dtype, out_dtype, batch,
            requested_tm=self.batch_tile, requested_tk=self.k_tile)

        flops = 2 * batch_p * sum(pdims[l] * pdims[l + 1] for l in range(L))
        param_bytes = sum(int(p.size) * p.dtype.itemsize for p in self._params)
        bytes_accessed = (batch_p * pdims[0] * jnp.dtype(x_dtype).itemsize
                          + param_bytes
                          + batch_p * pdims[-1] * jnp.dtype(out_dtype).itemsize)
        cost = pl.CostEstimate(flops=int(flops), transcendentals=0,
                               bytes_accessed=int(bytes_accessed))

        def fwd(x, *params):
            x_p = (jnp.zeros((batch_p, pdims[0]), dtype=x_dtype)
                   .at[:batch, :dims[0]].set(x))
            out_p = _fused_mlp_pallas(
                x_p, params, pdims=pdims, tm=tm, tk0=tk0,
                out_dtype=out_dtype, vmem_limit=vmem_limit, cost=cost)
            return out_p[:batch, :dims[-1]]

        return jax.jit(fwd)

    def __call__(self, x, out_dtype=None):
        out_dtype = jnp.dtype(out_dtype) if out_dtype is not None else jnp.dtype(x.dtype)
        lead = x.shape[:-1]
        x2 = x.reshape((-1, x.shape[-1]))          # nD input support
        key = (int(x2.shape[0]), str(jnp.dtype(x2.dtype)), str(out_dtype))
        fn = self._fwd_cache.get(key)
        if fn is None:
            fn = self._build_forward(int(x2.shape[0]), jnp.dtype(x2.dtype), out_dtype)
            self._fwd_cache[key] = fn
        out = fn(x2, *self._params)
        return out.reshape(lead + (self.dims[-1],))


# ----------------------------------------------------------------------------
# Pure-JAX reference (mirrors the kernel math: cast lhs to weight dtype,
# f32 accumulation, post-ReLU channel mask applied like the PyTorch forward).
# ----------------------------------------------------------------------------
def _reference_forward(x, weights, biases, channel_multiplier=1.0):
    out = x
    for w, b in zip(weights, biases):
        out = jnp.dot(out.astype(w.dtype), w, preferred_element_type=jnp.float32)
        out = jnp.maximum(out + b.astype(jnp.float32), 0.0)
        if channel_multiplier < 1.0:
            cutoff = math.ceil(out.shape[-1] * channel_multiplier)
            col = jnp.arange(out.shape[-1])
            out = jnp.where(col[None, :] < cutoff, out, 0.0)
    return out


if __name__ == "__main__":
    batch = 8
    inputs_dim = 32
    hidden_units = [64, 32]

    key = jax.random.PRNGKey(0)
    x = jax.random.normal(key, (batch, inputs_dim), dtype=jnp.float32)

    # Case 1: f32, channel_multiplier = 1.0
    m1 = DNNPallas(inputs_dim, hidden_units, channel_multiplier=1.0, seed=1024)
    o1 = jax.block_until_ready(m1(x))
    r1 = _reference_forward(x, m1.weights, m1.biases, 1.0)
    assert o1.shape == (batch, hidden_units[-1])
    assert jnp.allclose(o1, r1, atol=1e-5, rtol=1e-5)

    # Case 2: f32, channel_multiplier = 0.5 (host-side column zeroing path)
    m2 = DNNPallas(inputs_dim, hidden_units, channel_multiplier=0.5, seed=1024)
    o2 = jax.block_until_ready(m2(x))
    r2 = _reference_forward(x, m2.weights, m2.biases, 0.5)
    assert o2.shape == (batch, hidden_units[-1])
    assert jnp.allclose(o2, r2, atol=1e-5, rtol=1e-5)

    # Case 3: bf16 params + bf16 activations (half VMEM/HBM bytes, MXU-native).
    m3 = DNNPallas(inputs_dim, hidden_units, channel_multiplier=1.0, seed=7,
                   dtype=jnp.bfloat16, init_std=0.05)
    x3 = x.astype(jnp.bfloat16)
    o3 = jax.block_until_ready(m3(x3))
    r3 = _reference_forward(x3, m3.weights, m3.biases, 1.0)
    assert o3.dtype == jnp.bfloat16
    assert jnp.allclose(o3.astype(jnp.float32), r3.astype(jnp.float32),
                        atol=1e-3, rtol=5e-2)

    # Case 4: K-tiled first layer (wide input dim split along the reduction axis).
    m4 = DNNPallas(256, [128, 64], channel_multiplier=1.0, seed=3, k_tile=128)
    x4 = jax.random.normal(jax.random.PRNGKey(1), (batch, 256), dtype=jnp.float32)
    o4 = jax.block_until_ready(m4(x4))
    r4 = _reference_forward(x4, m4.weights, m4.biases, 1.0)
    assert o4.shape == (batch, 64)
    assert jnp.allclose(o4, r4, atol=1e-5, rtol=1e-5)

    print("KERNEL_OK")
</pallas_src>

<mosaic_0001>
module attributes {stable_mosaic.version = 11 : i64} {
  func.func @_fused_mlp_kernel(%arg0: i32, %arg1: memref<8x128xf32, #tpu.memory_space<vmem>>, %arg2: memref<128x128xf32, #tpu.memory_space<vmem>>, %arg3: memref<1x128xf32, #tpu.memory_space<vmem>>, %arg4: memref<128x128xf32, #tpu.memory_space<vmem>>, %arg5: memref<1x128xf32, #tpu.memory_space<vmem>>, %arg6: memref<8x128xf32, #tpu.memory_space<vmem>>) attributes {dimension_semantics = [#tpu.dimension_semantics<parallel>], iteration_bounds = array<i64: 1>, scalar_prefetch = 0 : i64, scratch_operands = 0 : i64, tpu.core_type = #tpu.core_type<tc>, window_params = [{transform_indices = @transform_0, window_bounds = array<i64: 8, 128>}, {pipeline_mode = #tpu.pipeline_mode<synchronous>, transform_indices = @transform_1, window_bounds = array<i64: 128, 128>}, {pipeline_mode = #tpu.pipeline_mode<synchronous>, transform_indices = @transform_2, window_bounds = array<i64: 1, 128>}, {pipeline_mode = #tpu.pipeline_mode<synchronous>, transform_indices = @transform_3, window_bounds = array<i64: 128, 128>}, {pipeline_mode = #tpu.pipeline_mode<synchronous>, transform_indices = @transform_4, window_bounds = array<i64: 1, 128>}, {transform_indices = @transform_5, window_bounds = array<i64: 8, 128>}]} {
    %c0 = arith.constant 0 : index
    %c0_0 = arith.constant 0 : index
    %0 = vector.load %arg1[%c0, %c0_0] : memref<8x128xf32, #tpu.memory_space<vmem>>, vector<8x128xf32>
    %c0_1 = arith.constant 0 : index
    %c0_2 = arith.constant 0 : index
    %1 = vector.load %arg2[%c0_1, %c0_2] : memref<128x128xf32, #tpu.memory_space<vmem>>, vector<128x128xf32>
    %c0_3 = arith.constant 0 : index
    %c0_4 = arith.constant 0 : index
    %2 = vector.load %arg3[%c0_3, %c0_4] : memref<1x128xf32, #tpu.memory_space<vmem>>, vector<1x128xf32>
    %cst = arith.constant dense<0.000000e+00> : vector<8x128xf32>
    %3 = tpu.matmul %0, %1, %cst {dimension_numbers = #tpu.dot_dimension_numbers<[1], [0], [0], [1], [0, 0, 1, 1], [], []>} : vector<8x128xf32>, vector<128x128xf32>, vector<8x128xf32> -> vector<8x128xf32>
    %4 = vector.broadcast %2 : vector<1x128xf32> to vector<8x128xf32>
    %5 = arith.addf %3, %4 : vector<8x128xf32>
    %cst_5 = arith.constant 0.000000e+00 : f32
    %6 = vector.broadcast %cst_5 : f32 to vector<8x128xf32>
    %7 = arith.maximumf %5, %6 : vector<8x128xf32>
    %c0_6 = arith.constant 0 : index
    %c0_7 = arith.constant 0 : index
    %8 = vector.load %arg4[%c0_6, %c0_7] : memref<128x128xf32, #tpu.memory_space<vmem>>, vector<128x128xf32>
    %c0_8 = arith.constant 0 : index
    %c0_9 = arith.constant 0 : index
    %9 = vector.load %arg5[%c0_8, %c0_9] : memref<1x128xf32, #tpu.memory_space<vmem>>, vector<1x128xf32>
    %cst_10 = arith.constant dense<0.000000e+00> : vector<8x128xf32>
    %10 = tpu.matmul %7, %8, %cst_10 {dimension_numbers = #tpu.dot_dimension_numbers<[1], [0], [0], [1], [0, 0, 1, 1], [], []>} : vector<8x128xf32>, vector<128x128xf32>, vector<8x128xf32> -> vector<8x128xf32>
    %11 = vector.broadcast %9 : vector<1x128xf32> to vector<8x128xf32>
    %12 = arith.addf %10, %11 : vector<8x128xf32>
    %cst_11 = arith.constant 0.000000e+00 : f32
    %13 = vector.broadcast %cst_11 : f32 to vector<8x128xf32>
    %14 = arith.maximumf %12, %13 : vector<8x128xf32>
    %c0_12 = arith.constant 0 : index
    %c0_13 = arith.constant 0 : index
    %15 = vector.load %arg6[%c0_12, %c0_13] : memref<8x128xf32, #tpu.memory_space<vmem>>, vector<8x128xf32>
    tpu.vector_store %arg6[%c0_12, %c0_13], %14 {strides = array<i32>} : memref<8x128xf32, #tpu.memory_space<vmem>>, vector<8x128xf32>,
    return
  }
  func.func @transform_0(%arg0: i32) -> (i32, i32) {
    %c0_i32 = arith.constant 0 : i32
    %c0_i32_0 = arith.constant 0 : i32
    return %arg0, %c0_i32 : i32, i32
  }
  func.func @transform_1(%arg0: i32) -> (i32, i32) {
    %c0_i32 = arith.constant 0 : i32
    %c0_i32_0 = arith.constant 0 : i32
    %c0_i32_1 = arith.constant 0 : i32
    return %c0_i32, %c0_i32_0 : i32, i32
  }
  func.func @transform_2(%arg0: i32) -> (i32, i32) {
    %c0_i32 = arith.constant 0 : i32
    %c0_i32_0 = arith.constant 0 : i32
    %c0_i32_1 = arith.constant 0 : i32
    return %c0_i32, %c0_i32_0 : i32, i32
  }
  func.func @transform_3(%arg0: i32) -> (i32, i32) {
    %c0_i32 = arith.constant 0 : i32
    %c0_i32_0 = arith.constant 0 : i32
    %c0_i32_1 = arith.constant 0 : i32
    return %c0_i32, %c0_i32_0 : i32, i32
  }
  func.func @transform_4(%arg0: i32) -> (i32, i32) {
    %c0_i32 = arith.constant 0 : i32
    %c0_i32_0 = arith.constant 0 : i32
    %c0_i32_1 = arith.constant 0 : i32
    return %c0_i32, %c0_i32_0 : i32, i32
  }
  func.func @transform_5(%arg0: i32) -> (i32, i32) {
    %c0_i32 = arith.constant 0 : i32
    %c0_i32_0 = arith.constant 0 : i32
    return %arg0, %c0_i32 : i32, i32
  }
}

</mosaic_0001>

<llo_original>
// kernel: fwd.1
$region0: #{fwd.1}
  #allocation0 [shape = 'u32[]', space=smem, size = 0x4, offset = 0x4, fixed_abs, tag = 'smem constant byte address 0x4 - core index']
  #allocation1 [shape = 'u32[144,128]{1,0:T(1,128)}', space=vmem, size = 0x12000, scoped, tag = 'internal scratch']
  %s0 = inlined_call_operand.vmem [shape: f32[8,128], index: 0, kind: input, shape index: {}]
  %s1 = inlined_call_operand.hbm [shape: f32[128,128], index: 1, kind: input, shape index: {}]
  %s2 = inlined_call_operand.vmem [shape: f32[1,128], index: 2, kind: input, shape index: {}]
  %s3 = inlined_call_operand.hbm [shape: f32[128,128], index: 3, kind: input, shape index: {}]
  %s4 = inlined_call_operand.vmem [shape: f32[1,128], index: 4, kind: input, shape index: {}]
  %s5 = inlined_call_operand.hbm [shape: f32[8,128], index: 5, kind: output, shape index: {}]
  %s6 = sld [smem:[#allocation0]]
  $region38: #{fwd.1} parent=0
    _
  %s8 = ssub.s32 1, %s6
  %s9 = scalar_select 0, %s8, %s6
  $region1: #{fwd.1} parent=0
    #allocation2 [shape = 'u8[65536]{0}', space=vmem, size = 0x10000, scoped, tag = 'input window, operand 1, single buffered']
    #allocation3 [shape = 's32[1]{0}', space=sflag, size = 0x4, scoped, tag = 'scoped memory for fwd.1']
    #allocation4 [shape = 's32[1]{0}', space=sflag, size = 0x4, scoped, tag = 'scoped memory for fwd.1']
    #allocation5 [shape = 'u8[65536]{0}', space=vmem, size = 0x10000, scoped, tag = 'input window, operand 3, single buffered']
    #allocation6 [shape = 's32[1]{0}', space=sflag, size = 0x4, scoped, tag = 'scoped memory for fwd.1']
    #allocation7 [shape = 'u8[4096]{0}', space=vmem, size = 0x1000, scoped, tag = 'output window, operand 0, single buffered']
    %10 = vsyncpa [#allocation3], 0
    %11 = vsyncpa [#allocation6], 0
    %12 = vsyncpa [#allocation4], 0
    // Predicated region
    $region2: #{fwd.1} parent=1 // pred_check
      _
    $region3: #{fwd.1} parent=1 // pred_check_branch
      %14 = sbr.rel (0) target = $region5
    $region4: #{fwd.1} parent=1 // pred_region
      _
    $region5: #{fwd.1} parent=1 // pred_fallthru
      _
    // Predicated region
    $region6: #{fwd.1} parent=1 // pred_check
      _
    $region7: #{fwd.1} parent=1 // pred_check_branch
      %16 = sbr.rel (0) target = $region9
    $region8: #{fwd.1} parent=1 // pred_region
      %s18 = ssub.s32 2048, 2048
      %19 = vsyncadd [#allocation3], %s18
      %s20 = sshll.u32 [#allocation2], 4
      %s21 = int_to_ptr.vmem [resolvable:$true] %s20
      %26 = dma.hbm_to_vmem [thread:$0]  %s1, 2048, %s21, [#allocation3], 128, 128, 8
    $region9: #{fwd.1} parent=1 // pred_fallthru
      _
    // Predicated region
    $region10: #{fwd.1} parent=1 // pred_check
      _
    $region11: #{fwd.1} parent=1 // pred_check_branch
      %28 = sbr.rel (0) target = $region13
    $region12: #{fwd.1} parent=1 // pred_region
      _
    $region13: #{fwd.1} parent=1 // pred_fallthru
      _
    // Predicated region
    $region14: #{fwd.1} parent=1 // pred_check
      _
    $region15: #{fwd.1} parent=1 // pred_check_branch
      %30 = sbr.rel (0) target = $region17
    $region16: #{fwd.1} parent=1 // pred_region
      %s32 = ssub.s32 2048, 2048
      %33 = vsyncadd [#allocation6], %s32
      %s34 = sshll.u32 [#allocation5], 4
      %s35 = int_to_ptr.vmem [resolvable:$true] %s34
      %40 = dma.hbm_to_vmem [thread:$0]  %s3, 2048, %s35, [#allocation6], 128, 128, 8
    $region17: #{fwd.1} parent=1 // pred_fallthru
      _
    // Predicated region
    $region18: #{fwd.1} parent=1 // pred_check
      _
    $region19: #{fwd.1} parent=1 // pred_check_branch
      %42 = sbr.rel (0) target = $region21
    $region20: #{fwd.1} parent=1 // pred_region
      _
    $region21: #{fwd.1} parent=1 // pred_fallthru
      _
    // Predicated region
    $region22: #{fwd.1} parent=1 // pred_check
      _
    $region23: #{fwd.1} parent=1 // pred_check_branch
      %44 = sbr.rel (0) target = $region25
    $region24: #{fwd.1} parent=1 // pred_region
      %45 = dma.done [#allocation3], 2048
    $region25: #{fwd.1} parent=1 // pred_fallthru
      _
    // Predicated region
    $region26: #{fwd.1} parent=1 // pred_check
      _
    $region27: #{fwd.1} parent=1 // pred_check_branch
      %47 = sbr.rel (0) target = $region29
    $region28: #{fwd.1} parent=1 // pred_region
      %48 = dma.done [#allocation6], 2048
    $region29: #{fwd.1} parent=1 // pred_fallthru
      _
    %v49 = vld [vmem:[%s0] sm:$0xff]
    %v50 = vld [vmem:[#allocation2] sm:$0xff]
    %v51 = vld [vmem:[#allocation2 + $0x8] sm:$0xff]
    %v52 = vld [vmem:[#allocation2 + $0x10] sm:$0xff]
    %v53 = vld [vmem:[#allocation2 + $0x18] sm:$0xff]
    %v54 = vld [vmem:[#allocation2 + $0x20] sm:$0xff]
    %v55 = vld [vmem:[#allocation2 + $0x28] sm:$0xff]
    %v56 = vld [vmem:[#allocation2 + $0x30] sm:$0xff]
    %v57 = vld [vmem:[#allocation2 + $0x38] sm:$0xff]
    %v58 = vld [vmem:[#allocation2 + $0x40] sm:$0xff]
    %v59 = vld [vmem:[#allocation2 + $0x48] sm:$0xff]
    %v60 = vld [vmem:[#allocation2 + $0x50] sm:$0xff]
    %v61 = vld [vmem:[#allocation2 + $0x58] sm:$0xff]
    %v62 = vld [vmem:[#allocation2 + $0x60] sm:$0xff]
    %v63 = vld [vmem:[#allocation2 + $0x68] sm:$0xff]
    %v64 = vld [vmem:[#allocation2 + $0x70] sm:$0xff]
    %v65 = vld [vmem:[#allocation2 + $0x78] sm:$0xff]
    %v66 = vld [vmem:[%s2] sm:$0x1]
    %v68 = vlaneseq
    %v69 = vshrl.u32 %v68, 7
    %v70 = vsub.s32 0, %v69
    %v71 = vrot.slane %v66, %v70
    %73 = vmatprep.subr.mxu0 0.0
    %74 = vmatpush1.msra.mxu0 %v50
    %75 = vmatprep.subr.mxu0 0.0
    %76 = vmatpush1.msra.mxu0 %v51
    %77 = vmatprep.subr.mxu0 0.0
    %78 = vmatpush1.msra.mxu0 %v52
    %79 = vmatprep.subr.mxu0 0.0
    %80 = vmatpush1.msra.mxu0 %v53
    %81 = vmatprep.subr.mxu0 0.0
    %82 = vmatpush1.msra.mxu0 %v54
    %83 = vmatprep.subr.mxu0 0.0
    %84 = vmatpush1.msra.mxu0 %v55
    %85 = vmatprep.subr.mxu0 0.0
    %86 = vmatpush1.msra.mxu0 %v56
    %87 = vmatprep.subr.mxu0 0.0
    %88 = vmatpush1.msra.mxu0 %v57
    %89 = vmatprep.subr.mxu0 0.0
    %90 = vmatpush1.msra.mxu0 %v58
    %91 = vmatprep.subr.mxu0 0.0
    %92 = vmatpush1.msra.mxu0 %v59
    %93 = vmatprep.subr.mxu0 0.0
    %94 = vmatpush1.msra.mxu0 %v60
    %95 = vmatprep.subr.mxu0 0.0
    %96 = vmatpush1.msra.mxu0 %v61
    %97 = vmatprep.subr.mxu0 0.0
    %98 = vmatpush1.msra.mxu0 %v62
    %99 = vmatprep.subr.mxu0 0.0
    %100 = vmatpush1.msra.mxu0 %v63
    %101 = vmatprep.subr.mxu0 0.0
    %102 = vmatpush1.msra.mxu0 %v64
    %103 = vmatprep.subr.mxu0 0.0
    %104 = vmatpush1.msra.mxu0 %v65
    %105 = vmatprep.subr.mxu0 0.0
    %106 = vmatpush1.msra.mxu0 0.0
    %107 = vmatprep.subr.mxu0 0.0
    %108 = vmatpush1.msra.mxu0 0.0
    %109 = vmatprep.subr.mxu0 0.0
    %110 = vmatpush1.msra.mxu0 0.0
    %111 = vmatprep.subr.mxu0 0.0
    %112 = vmatpush1.msra.mxu0 0.0
    %113 = vmatprep.subr.mxu0 0.0
    %114 = vmatpush1.msra.mxu0 0.0
    %115 = vmatprep.subr.mxu0 0.0
    %116 = vmatpush1.msra.mxu0 0.0
    %117 = vmatprep.subr.mxu0 0.0
    %118 = vmatpush1.msra.mxu0 0.0
    %119 = vmatprep.subr.mxu0 0.0
    %120 = vmatpush1.msra.mxu0 0.0
    %121 = vmatprep.subr.mxu0 0.0
    %122 = vmatpush1.msra.mxu0 0.0
    %123 = vmatprep.subr.mxu0 0.0
    %124 = vmatpush1.msra.mxu0 0.0
    %125 = vmatprep.subr.mxu0 0.0
    %126 = vmatpush1.msra.mxu0 0.0
    %127 = vmatprep.subr.mxu0 0.0
    %128 = vmatpush1.msra.mxu0 0.0
    %129 = vmatprep.subr.mxu0 0.0
    %130 = vmatpush1.msra.mxu0 0.0
    %131 = vmatprep.subr.mxu0 0.0
    %132 = vmatpush1.msra.mxu0 0.0
    %133 = vmatprep.subr.mxu0 0.0
    %134 = vmatpush1.msra.mxu0 0.0
    %135 = vmatprep.subr.mxu0 0.0
    %136 = vmatpush1.msra.mxu0 0.0
    %137 = vmatprep.mubr.f32.mxu0 0.0
    %138 = vmatmul.mubr.f32.gmra.mrb[0].mxu0 %v49
    %v139 = vpop.f32.mrb[0].mxu0
    %v140 = vadd.f32 %v71, %v139
    %v141 = vpop.f32.mrb[0].mxu0
    %142 = vdwg.mxu0
    %v143 = vmax.f32 %v140, 0.0
    %v144 = vld [vmem:[#allocation5] sm:$0xff]
    %v145 = vld [vmem:[#allocation5 + $0x8] sm:$0xff]
    %v146 = vld [vmem:[#allocation5 + $0x10] sm:$0xff]
    %v147 = vld [vmem:[#allocation5 + $0x18] sm:$0xff]
    %v148 = vld [vmem:[#allocation5 + $0x20] sm:$0xff]
    %v149 = vld [vmem:[#allocation5 + $0x28] sm:$0xff]
    %v150 = vld [vmem:[#allocation5 + $0x30] sm:$0xff]
    %v151 = vld [vmem:[#allocation5 + $0x38] sm:$0xff]
    %v152 = vld [vmem:[#allocation5 + $0x40] sm:$0xff]
    %v153 = vld [vmem:[#allocation5 + $0x48] sm:$0xff]
    %v154 = vld [vmem:[#allocation5 + $0x50] sm:$0xff]
    %v155 = vld [vmem:[#allocation5 + $0x58] sm:$0xff]
    %v156 = vld [vmem:[#allocation5 + $0x60] sm:$0xff]
    %v157 = vld [vmem:[#allocation5 + $0x68] sm:$0xff]
    %v158 = vld [vmem:[#allocation5 + $0x70] sm:$0xff]
    %v159 = vld [vmem:[#allocation5 + $0x78] sm:$0xff]
    %v160 = vld [vmem:[%s4] sm:$0x1]
    %v162 = vlaneseq
    %v163 = vshrl.u32 %v162, 7
    %v164 = vsub.s32 0, %v163
    %v165 = vrot.slane %v160, %v164
    %167 = vmatprep.subr.mxu0 0.0
    %168 = vmatpush1.msra.mxu0 %v144
    %169 = vmatprep.subr.mxu0 0.0
    %170 = vmatpush1.msra.mxu0 %v145
    %171 = vmatprep.subr.mxu0 0.0
    %172 = vmatpush1.msra.mxu0 %v146
    %173 = vmatprep.subr.mxu0 0.0
    %174 = vmatpush1.msra.mxu0 %v147
    %175 = vmatprep.subr.mxu0 0.0
    %176 = vmatpush1.msra.mxu0 %v148
    %177 = vmatprep.subr.mxu0 0.0
    %178 = vmatpush1.msra.mxu0 %v149
    %179 = vmatprep.subr.mxu0 0.0
    %180 = vmatpush1.msra.mxu0 %v150
    %181 = vmatprep.subr.mxu0 0.0
    %182 = vmatpush1.msra.mxu0 %v151
    %183 = vmatprep.subr.mxu0 0.0
    %184 = vmatpush1.msra.mxu0 %v152
    %185 = vmatprep.subr.mxu0 0.0
    %186 = vmatpush1.msra.mxu0 %v153
    %187 = vmatprep.subr.mxu0 0.0
    %188 = vmatpush1.msra.mxu0 %v154
    %189 = vmatprep.subr.mxu0 0.0
    %190 = vmatpush1.msra.mxu0 %v155
    %191 = vmatprep.subr.mxu0 0.0
    %192 = vmatpush1.msra.mxu0 %v156
    %193 = vmatprep.subr.mxu0 0.0
    %194 = vmatpush1.msra.mxu0 %v157
    %195 = vmatprep.subr.mxu0 0.0
    %196 = vmatpush1.msra.mxu0 %v158
    %197 = vmatprep.subr.mxu0 0.0
    %198 = vmatpush1.msra.mxu0 %v159
    %199 = vmatprep.subr.mxu0 0.0
    %200 = vmatpush1.msra.mxu0 0.0
    %201 = vmatprep.subr.mxu0 0.0
    %202 = vmatpush1.msra.mxu0 0.0
    %203 = vmatprep.subr.mxu0 0.0
    %204 = vmatpush1.msra.mxu0 0.0
    %205 = vmatprep.subr.mxu0 0.0
    %206 = vmatpush1.msra.mxu0 0.0
    %207 = vmatprep.subr.mxu0 0.0
    %208 = vmatpush1.msra.mxu0 0.0
    %209 = vmatprep.subr.mxu0 0.0
    %210 = vmatpush1.msra.mxu0 0.0
    %211 = vmatprep.subr.mxu0 0.0
    %212 = vmatpush1.msra.mxu0 0.0
    %213 = vmatprep.subr.mxu0 0.0
    %214 = vmatpush1.msra.mxu0 0.0
    %215 = vmatprep.subr.mxu0 0.0
    %216 = vmatpush1.msra.mxu0 0.0
    %217 = vmatprep.subr.mxu0 0.0
    %218 = vmatpush1.msra.mxu0 0.0
    %219 = vmatprep.subr.mxu0 0.0
    %220 = vmatpush1.msra.mxu0 0.0
    %221 = vmatprep.subr.mxu0 0.0
    %222 = vmatpush1.msra.mxu0 0.0
    %223 = vmatprep.subr.mxu0 0.0
    %224 = vmatpush1.msra.mxu0 0.0
    %225 = vmatprep.subr.mxu0 0.0
    %226 = vmatpush1.msra.mxu0 0.0
    %227 = vmatprep.subr.mxu0 0.0
    %228 = vmatpush1.msra.mxu0 0.0
    %229 = vmatprep.subr.mxu0 0.0
    %230 = vmatpush1.msra.mxu0 0.0
    %231 = vmatprep.mubr.f32.mxu0 0.0
    %232 = vmatmul.mubr.f32.gmra.mrb[0].mxu0 %v143
    %v233 = vpop.f32.mrb[0].mxu0
    %v234 = vadd.f32 %v165, %v233
    %v235 = vpop.f32.mrb[0].mxu0
    %236 = vdwg.mxu0
    %v237 = vmax.f32 %v234, 0.0
    %238 = vst [vmem:[#allocation7] sm:$0xff] %v237
    // Predicated region
    $region30: #{fwd.1} parent=1 // pred_check
      _
    $region31: #{fwd.1} parent=1 // pred_check_branch
      %240 = sbr.rel (0) target = $region33
    $region32: #{fwd.1} parent=1 // pred_region
      %s242 = ssub.s32 128, 128
      %243 = vsyncadd [#allocation4], %s242
      %s245 = sshll.u32 [#allocation7], 4
      %s246 = int_to_ptr.vmem [resolvable:$true] %s245
      %248 = dma.vmem_to_hbm [thread:$0]  %s246, 128, %s5, [#allocation4]
    $region33: #{fwd.1} parent=1 // pred_fallthru
      _
    // Predicated region
    $region34: #{fwd.1} parent=1 // pred_check
      _
    $region35: #{fwd.1} parent=1 // pred_check_branch
      %250 = sbr.rel (0) target = $region37
    $region36: #{fwd.1} parent=1 // pred_region
      %251 = dma.done [#allocation4], 128
    $region37: #{fwd.1} parent=1 // pred_fallthru
      _
    %252 = vsyncpa [#allocation3], 1
    %253 = vsyncpa [#allocation6], 1
    %254 = vsyncpa [#allocation4], 1

</llo_original>
